<compile_context>
chip_gen: v7x
topology: tpu7x:2x2x1
jax: 0.10.0
libtpu: 0.0.40
codegen_flags: <defaults>
</compile_context>

<pallas_src>
import math

import jax
import jax.numpy as jnp
from jax.experimental import pallas as pl
from jax.experimental.pallas import tpu as pltpu


def _copy_kernel(x_ref, o_ref):
    # Pure streaming copy: straight vld/vst, no XLU relayout, no masked stores.
    o_ref[...] = x_ref[...]


def _pick_lanes(total):
    """Largest lane width (multiple of 128, <= 2048) dividing `total`,
    preferring widths that leave a sublane-dense (multiple-of-8) row count."""
    candidates = [l for l in (2048, 1792, 1536, 1280, 1024, 896, 768, 640,
                              512, 384, 256, 128) if total % l == 0]
    if not candidates:
        return None
    for l in candidates:
        if (total // l) % 8 == 0:
            return l
    return candidates[0]


def _pick_row_tile(rows, lanes, itemsize, budget_bytes=4 << 20):
    """Row-tile from a ~4 MiB VMEM budget (safe even for v7x's smaller VMEM
    with double-buffered input + output), preferring multiples of 8."""
    target = min(rows, max(8, budget_bytes // (lanes * itemsize)))
    for t in range(target - (target % 8), 0, -8):
        if rows % t == 0:
            return t
    # Fall back to the full extent (always a legal block dim).
    return rows


def reshape_to_image(x, image_channels):
    """Pallas equivalent of Reshape(image_channels).forward(x).

    x: (B, N) with N = image_channels * H * W and H == W.
    returns: (B, image_channels, H, W)
    """
    batch_size = x.shape[0]
    total = x.size
    C = image_channels
    image_size = int(math.isqrt(total // (batch_size * C)))
    H = W = image_size
    assert batch_size * C * H * W == total, "input not reshapeable to a square image"

    # NOTE: the reshape itself needs no data movement; the kernel exists only
    # as an explicit (composable) copy and is kept flat so it degenerates to
    # the cheapest possible HBM->VMEM->HBM stream.
    flat = x.reshape(-1)                       # metadata-only

    lanes = _pick_lanes(total)
    if lanes is None:
        # Rare fallback: total not a multiple of 128 — copy the whole slab in
        # one full-array block (full-extent dims are always legal).
        x2d = x.reshape(batch_size, C * H * W)
        out = pl.pallas_call(
            _copy_kernel,
            out_shape=jax.ShapeDtypeStruct(x2d.shape, x.dtype),
        )(x2d)
        return out.reshape(batch_size, C, H, W)

    rows = total // lanes
    row_tile = _pick_row_tile(rows, lanes, jnp.dtype(x.dtype).itemsize)
    flat2d = flat.reshape(rows, lanes)         # metadata-only, lane-dense view

    out_flat = pl.pallas_call(
        _copy_kernel,
        out_shape=jax.ShapeDtypeStruct((rows, lanes), x.dtype),
        grid_spec=pltpu.PrefetchScalarGridSpec(
            num_scalar_prefetch=0,
            grid=(rows // row_tile,),
            in_specs=[pl.BlockSpec((row_tile, lanes), lambda i: (i, 0))],
            out_specs=pl.BlockSpec((row_tile, lanes), lambda i: (i, 0)),
        ),
        compiler_params=pltpu.CompilerParams(
            # Every grid step writes an independent block -> parallel, so the
            # grid can shard across v7x's two TensorCores (no-op on v5e/v6e).
            dimension_semantics=("parallel",),
            vmem_limit_bytes=32 << 20,
        ),
    )(flat2d)

    # Final shape change is free (contiguous row-major reshape).
    return out_flat.reshape(batch_size, C, H, W)


if __name__ == "__main__":
    # Small shapes consistent with the module: batch=2, channels=4, image 16x16.
    B, C, H, W = 2, 4, 16, 16
    key = jax.random.PRNGKey(0)
    x = jax.random.normal(key, (B, C * H * W), dtype=jnp.float32)

    y = reshape_to_image(x, image_channels=C)
    y = jax.block_until_ready(y)

    # Correctness check against plain reshape semantics (torch .view).
    y_ref = x.reshape(B, C, H, W)
    assert y.shape == (B, C, H, W)
    assert jnp.array_equal(y, y_ref)

    print("KERNEL_OK")
</pallas_src>

<mosaic_0001>
module attributes {stable_mosaic.version = 11 : i64} {
  func.func @_copy_kernel(%arg0: i32, %arg1: memref<8x256xf32, #tpu.memory_space<vmem>>, %arg2: memref<8x256xf32, #tpu.memory_space<vmem>>) attributes {dimension_semantics = [#tpu.dimension_semantics<parallel>], iteration_bounds = array<i64: 1>, scalar_prefetch = 0 : i64, scratch_operands = 0 : i64, tpu.core_type = #tpu.core_type<tc>, window_params = [{transform_indices = @transform_0, window_bounds = array<i64: 8, 256>}, {transform_indices = @transform_1, window_bounds = array<i64: 8, 256>}]} {
    %c0 = arith.constant 0 : index
    %c0_0 = arith.constant 0 : index
    %0 = vector.load %arg1[%c0, %c0_0] : memref<8x256xf32, #tpu.memory_space<vmem>>, vector<8x256xf32>
    %c0_1 = arith.constant 0 : index
    %c0_2 = arith.constant 0 : index
    %1 = vector.load %arg2[%c0_1, %c0_2] : memref<8x256xf32, #tpu.memory_space<vmem>>, vector<8x256xf32>
    tpu.vector_store %arg2[%c0_1, %c0_2], %0 {strides = array<i32>} : memref<8x256xf32, #tpu.memory_space<vmem>>, vector<8x256xf32>,
    return
  }
  func.func @transform_0(%arg0: i32) -> (i32, i32) {
    %c0_i32 = arith.constant 0 : i32
    %c0_i32_0 = arith.constant 0 : i32
    return %arg0, %c0_i32 : i32, i32
  }
  func.func @transform_1(%arg0: i32) -> (i32, i32) {
    %c0_i32 = arith.constant 0 : i32
    %c0_i32_0 = arith.constant 0 : i32
    return %arg0, %c0_i32 : i32, i32
  }
}

</mosaic_0001>

<llo_original>
// kernel: tpu_custom_call.1
$region0: #{tpu_custom_call.1}
  #allocation0 [shape = 'u32[]', space=smem, size = 0x4, offset = 0x4, fixed_abs, tag = 'smem constant byte address 0x4 - core index']
  #allocation1 [shape = 'u32[144,128]{1,0:T(1,128)}', space=vmem, size = 0x12000, scoped, tag = 'internal scratch']
  %s0 = inlined_call_operand.hbm [shape: f32[8,256], index: 0, kind: input, shape index: {}]
  %s1 = inlined_call_operand.hbm [shape: f32[8,256], index: 1, kind: output, shape index: {}]
  %s2 = sld [smem:[#allocation0]]
  $region18: #{tpu_custom_call.1} parent=0
    _
  %s4 = ssub.s32 1, %s2
  %s5 = scalar_select 0, %s4, %s2
  $region1: #{tpu_custom_call.1} parent=0
    #allocation2 [shape = 'u8[8192]{0}', space=vmem, size = 0x2000, scoped, tag = 'input window, operand 0, single buffered']
    #allocation3 [shape = 's32[1]{0}', space=sflag, size = 0x4, scoped, tag = 'scoped memory for tpu_custom_call.1']
    #allocation4 [shape = 's32[1]{0}', space=sflag, size = 0x4, scoped, tag = 'scoped memory for tpu_custom_call.1']
    #allocation5 [shape = 'u8[8192]{0}', space=vmem, size = 0x2000, scoped, tag = 'output window, operand 0, single buffered']
    %6 = vsyncpa [#allocation3], 0
    %7 = vsyncpa [#allocation4], 0
    // Predicated region
    $region2: #{tpu_custom_call.1} parent=1 // pred_check
      _
    $region3: #{tpu_custom_call.1} parent=1 // pred_check_branch
      %9 = sbr.rel (0) target = $region5
    $region4: #{tpu_custom_call.1} parent=1 // pred_region
      %s11 = ssub.s32 256, 256
      %12 = vsyncadd [#allocation3], %s11
      %s14 = sshll.u32 [#allocation2], 4
      %s15 = int_to_ptr.vmem [resolvable:$true] %s14
      %17 = dma.hbm_to_vmem [thread:$0]  %s0, 256, %s15, [#allocation3]
    $region5: #{tpu_custom_call.1} parent=1 // pred_fallthru
      _
    // Predicated region
    $region6: #{tpu_custom_call.1} parent=1 // pred_check
      _
    $region7: #{tpu_custom_call.1} parent=1 // pred_check_branch
      %19 = sbr.rel (0) target = $region9
    $region8: #{tpu_custom_call.1} parent=1 // pred_region
      %20 = dma.done [#allocation3], 256
    $region9: #{tpu_custom_call.1} parent=1 // pred_fallthru
      _
    %v21 = vld [vmem:[#allocation2] sm:$0xff]
    %v22 = vld [vmem:[#allocation2 + $0x8] sm:$0xff]
    %23 = vst [vmem:[#allocation5] sm:$0xff] %v21
    %24 = vst [vmem:[#allocation5 + $0x8] sm:$0xff] %v22
    // Predicated region
    $region10: #{tpu_custom_call.1} parent=1 // pred_check
      _
    $region11: #{tpu_custom_call.1} parent=1 // pred_check_branch
      %26 = sbr.rel (0) target = $region13
    $region12: #{tpu_custom_call.1} parent=1 // pred_region
      %s28 = ssub.s32 256, 256
      %29 = vsyncadd [#allocation4], %s28
      %s31 = sshll.u32 [#allocation5], 4
      %s32 = int_to_ptr.vmem [resolvable:$true] %s31
      %34 = dma.vmem_to_hbm [thread:$0]  %s32, 256, %s1, [#allocation4]
    $region13: #{tpu_custom_call.1} parent=1 // pred_fallthru
      _
    // Predicated region
    $region14: #{tpu_custom_call.1} parent=1 // pred_check
      _
    $region15: #{tpu_custom_call.1} parent=1 // pred_check_branch
      %36 = sbr.rel (0) target = $region17
    $region16: #{tpu_custom_call.1} parent=1 // pred_region
      %37 = dma.done [#allocation4], 256
    $region17: #{tpu_custom_call.1} parent=1 // pred_fallthru
      _
    %38 = vsyncpa [#allocation3], 1
    %39 = vsyncpa [#allocation4], 1

</llo_original>
